<compile_context>
chip_gen: v5e
topology: v5e:2x2
jax: 0.10.0
libtpu: 0.0.40
codegen_flags: <defaults>
</compile_context>

<pallas_src>
import jax
import jax.numpy as jnp
from jax import lax
from jax.experimental import pallas as pl
from jax.experimental.pallas import tpu as pltpu


# ---------------------------------------------------------------------------
# Kernels
# ---------------------------------------------------------------------------
def _hidden_layers(x_ref, w1_ref, b1_ref, w2_ref, b2_ref):
    """Layers 1-2: Linear(in->512)+ReLU, Linear(512->256)+sigmoid. f32 out."""
    # Layer 1: single K=in_dim bf16 matmul, f32 accumulation.
    h1 = jnp.dot(x_ref[...], w1_ref[...],
                 preferred_element_type=jnp.float32) + b1_ref[...]
    h1 = jnp.maximum(h1, 0.0)                                   # ReLU in f32
    # Layer 2: Linear(512 -> 256), f32 accumulation.
    h2 = jnp.dot(h1.astype(jnp.bfloat16), w2_ref[...],
                 preferred_element_type=jnp.float32) + b2_ref[...]
    # sigmoid(z) = 0.5 * tanh(0.5 * z) + 0.5  -> one EUP transcendental.
    return 0.5 * jnp.tanh(0.5 * h2) + 0.5


def critic_kernel_head1(x_ref, w1_ref, b1_ref, w2_ref, b2_ref,
                        w3_ref, b3_ref, o_ref):
    """out_dim == 1: lane-dense (1, tb) row via a tiny trans-matmul."""
    h2 = _hidden_layers(x_ref, w1_ref, b1_ref, w2_ref, b2_ref)   # (tb, 256)
    # (1, 256) x (tb, 256)^T -> (1, tb): contraction on both last dims
    # (same pattern as q @ k.T), result is natively lane-dense.
    q = lax.dot_general(w3_ref[...], h2.astype(jnp.bfloat16),
                        dimension_numbers=(((1,), (1,)), ((), ())),
                        preferred_element_type=jnp.float32)      # (1, tb)
    o_ref[...] = q + b3_ref[...]                                 # b3 is (1, 1)


def critic_kernel_headN(x_ref, w1_ref, b1_ref, w2_ref, b2_ref,
                        w3_ref, b3_ref, o_ref):
    """General out_dim: standard MXU matmul for the last layer."""
    h2 = _hidden_layers(x_ref, w1_ref, b1_ref, w2_ref, b2_ref)
    o_ref[...] = jnp.dot(h2.astype(jnp.bfloat16), w3_ref[...],
                         preferred_element_type=jnp.float32) + b3_ref[...]


# ---------------------------------------------------------------------------
# Tiling
# ---------------------------------------------------------------------------
def _pick_batch_tile(B, block_b):
    """Largest batch tile that divides B, fits block_b and keeps layouts legal."""
    cap = min(block_b, B)
    # Keep >= 2 grid steps once the batch is big enough so v7x's two
    # TensorCores (and v5e/v6e megacore) both get work on the parallel axis.
    if B >= 256:
        cap = min(cap, max(128, B // 2))
    # Largest multiple-of-128 divisor of B that fits the cap: satisfies every
    # (8, 128) BlockSpec constraint, including the lane-dense (1, tb) output.
    for tb in range(cap - cap % 128, 0, -128):
        if B % tb == 0:
            return tb
    # Fallback: one full-batch tile (every block spans the full array dims, so
    # all layout constraints hold). Typical DDPG batches (<= a few thousand
    # rows) fit VMEM comfortably in this mode.
    return B


# ---------------------------------------------------------------------------
# Wrapper
# ---------------------------------------------------------------------------
def critic_forward(s, a, params, *, block_b=1024):
    """Full CriticNet forward in one pallas_call.

    params = (w1, b1, w2, b2, w3, b3) with
      w1: (state_dim + act_dim, 512) bf16,
      w2: (512, 256)                 bf16,
      w3: (1, 256) bf16 if out_dim == 1 else (256, out_dim) bf16,
      biases f32 row vectors (1, fan_out).
    """
    w1, b1, w2, b2, w3, b3 = params
    B = s.shape[0]
    in_dim = w1.shape[0]
    out_dim = b3.shape[1]

    # Fold the concat here and hand the kernel bf16 activations directly, so
    # layer 1 is a single K=in_dim MXU matmul against a VMEM-resident w1.
    x = jnp.concatenate([s, a], axis=1).astype(jnp.bfloat16)     # (B, in_dim)

    tb = _pick_batch_tile(B, block_b)
    grid = (B // tb,)

    const = lambda i: (0, 0)            # weights/biases: same block every step
    in_specs = [
        pl.BlockSpec((tb, in_dim), lambda i: (i, 0)),
        pl.BlockSpec(w1.shape, const),
        pl.BlockSpec(b1.shape, const),
        pl.BlockSpec(w2.shape, const),
        pl.BlockSpec(b2.shape, const),
        pl.BlockSpec(w3.shape, const),
        pl.BlockSpec(b3.shape, const),
    ]

    if out_dim == 1:
        kernel = critic_kernel_head1
        # Lane-dense layout: batch on the lane axis, reshaped to (B, 1) below.
        out_shape = jax.ShapeDtypeStruct((1, B), jnp.float32)
        out_specs = pl.BlockSpec((1, tb), lambda i: (0, i))
    else:
        kernel = critic_kernel_headN
        out_shape = jax.ShapeDtypeStruct((B, out_dim), jnp.float32)
        out_specs = pl.BlockSpec((tb, out_dim), lambda i: (i, 0))

    args = (x, w1, b1, w2, b2, w3, b3)
    flops = 2 * B * (in_dim * 512 + 512 * 256 + 256 * out_dim)
    bytes_accessed = (sum(int(t.size) * t.dtype.itemsize for t in args)
                      + B * out_dim * 4)
    cost = pl.CostEstimate(flops=flops,
                           transcendentals=B * 256,       # sigmoid-as-tanh
                           bytes_accessed=bytes_accessed)

    out = pl.pallas_call(
        kernel,
        out_shape=out_shape,
        grid=grid,
        in_specs=in_specs,
        out_specs=out_specs,
        compiler_params=pltpu.CompilerParams(
            dimension_semantics=("parallel",),        # megacore / v7x 2-TC
            vmem_limit_bytes=32 * 1024 * 1024,        # safe on v7x's 64 MiB
        ),
        cost_estimate=cost,
    )(*args)

    if out_dim == 1:
        out = out.reshape(B, 1)
    return out


# ---------------------------------------------------------------------------
# Init + reference
# ---------------------------------------------------------------------------
def init_params(key, state_dim, act_dim, out_dim):
    """Matches the PyTorch module: weights ~ N(0, 0.1), biases ~ nn.Linear default.

    nn.Linear weight is (out, in); we store the transpose (in, out), cast the
    weights to bf16, and store w3 directly in the layout the kernel consumes.
    """
    in_dim = state_dim + act_dim
    ks = jax.random.split(key, 6)

    def linear(kw, kb, fan_in, fan_out):
        w = 0.1 * jax.random.normal(kw, (fan_in, fan_out), dtype=jnp.float32)
        bound = 1.0 / (fan_in ** 0.5)
        b = jax.random.uniform(kb, (1, fan_out), dtype=jnp.float32,
                               minval=-bound, maxval=bound)
        return w, b

    w1, b1 = linear(ks[0], ks[1], in_dim, 512)
    w2, b2 = linear(ks[2], ks[3], 512, 256)
    w3, b3 = linear(ks[4], ks[5], 256, out_dim)

    w1 = w1.astype(jnp.bfloat16)                       # (in_dim, 512)
    w2 = w2.astype(jnp.bfloat16)                       # (512, 256)
    if out_dim == 1:
        w3 = w3.T.astype(jnp.bfloat16)                 # (1, 256) row head
    else:
        w3 = w3.astype(jnp.bfloat16)                   # (256, out_dim) MXU head
    return (w1, b1, w2, b2, w3, b3)


def reference_forward(s, a, params):
    """Plain-JAX reference with the same bf16 quantization as the kernel."""
    w1, b1, w2, b2, w3, b3 = params
    out_dim = b3.shape[1]
    f32 = jnp.float32
    x = jnp.concatenate([s, a], axis=1).astype(jnp.bfloat16).astype(f32)
    h1 = jnp.maximum(x @ w1.astype(f32) + b1, 0.0)
    h1_q = h1.astype(jnp.bfloat16).astype(f32)
    h2 = jax.nn.sigmoid(h1_q @ w2.astype(f32) + b2)
    h2_q = h2.astype(jnp.bfloat16).astype(f32)
    w3f = w3.astype(f32)
    if out_dim == 1:
        return h2_q @ w3f.T + b3       # w3 stored as (1, 256)
    return h2_q @ w3f + b3             # w3 stored as (256, out_dim)


# ---------------------------------------------------------------------------
if __name__ == "__main__":
    # Small shapes consistent with a DDPG critic: batch=8, state=24, action=8,
    # CriticNet(input=state+action=32, output=1).
    B, STATE_DIM, ACT_DIM, OUT_DIM = 8, 24, 8, 1

    key = jax.random.PRNGKey(0)
    k_s, k_a, k_p = jax.random.split(key, 3)
    s = jax.random.normal(k_s, (B, STATE_DIM), dtype=jnp.float32)
    a = jax.random.normal(k_a, (B, ACT_DIM), dtype=jnp.float32)
    params = init_params(k_p, STATE_DIM, ACT_DIM, OUT_DIM)

    q = critic_forward(s, a, params)
    q = jax.block_until_ready(q)

    q_ref = reference_forward(s, a, params)
    assert q.shape == (B, OUT_DIM)
    assert jnp.allclose(q, q_ref, atol=1e-2, rtol=1e-2)

    print("KERNEL_OK")
</pallas_src>

<mosaic_0001>
module attributes {stable_mosaic.version = 11 : i64} {
  func.func @critic_kernel_head1(%arg0: i32, %arg1: memref<8x32xbf16, #tpu.memory_space<vmem>>, %arg2: memref<32x512xbf16, #tpu.memory_space<vmem>>, %arg3: memref<1x512xf32, #tpu.memory_space<vmem>>, %arg4: memref<512x256xbf16, #tpu.memory_space<vmem>>, %arg5: memref<1x256xf32, #tpu.memory_space<vmem>>, %arg6: memref<1x256xbf16, #tpu.memory_space<vmem>>, %arg7: memref<1x1xf32, #tpu.memory_space<vmem>>, %arg8: memref<1x8xf32, #tpu.memory_space<vmem>>) attributes {dimension_semantics = [#tpu.dimension_semantics<parallel>], iteration_bounds = array<i64: 1>, scalar_prefetch = 0 : i64, scratch_operands = 0 : i64, tpu.core_type = #tpu.core_type<tc>, window_params = [{transform_indices = @transform_0, window_bounds = array<i64: 8, 32>}, {pipeline_mode = #tpu.pipeline_mode<synchronous>, transform_indices = @transform_1, window_bounds = array<i64: 32, 512>}, {pipeline_mode = #tpu.pipeline_mode<synchronous>, transform_indices = @transform_2, window_bounds = array<i64: 1, 512>}, {pipeline_mode = #tpu.pipeline_mode<synchronous>, transform_indices = @transform_3, window_bounds = array<i64: 512, 256>}, {pipeline_mode = #tpu.pipeline_mode<synchronous>, transform_indices = @transform_4, window_bounds = array<i64: 1, 256>}, {pipeline_mode = #tpu.pipeline_mode<synchronous>, transform_indices = @transform_5, window_bounds = array<i64: 1, 256>}, {pipeline_mode = #tpu.pipeline_mode<synchronous>, transform_indices = @transform_6, window_bounds = array<i64: 1, 1>}, {transform_indices = @transform_7, window_bounds = array<i64: 1, 8>}]} {
    %c0 = arith.constant 0 : index
    %c0_0 = arith.constant 0 : index
    %0 = vector.load %arg1[%c0, %c0_0] : memref<8x32xbf16, #tpu.memory_space<vmem>>, vector<8x32xbf16>
    %c0_1 = arith.constant 0 : index
    %c0_2 = arith.constant 0 : index
    %1 = vector.load %arg2[%c0_1, %c0_2] : memref<32x512xbf16, #tpu.memory_space<vmem>>, vector<32x512xbf16>
    %cst = arith.constant dense<0.000000e+00> : vector<8x512xf32>
    %2 = tpu.matmul %0, %1, %cst {dimension_numbers = #tpu.dot_dimension_numbers<[1], [0], [0], [1], [0, 0, 1, 1], [], []>} : vector<8x32xbf16>, vector<32x512xbf16>, vector<8x512xf32> -> vector<8x512xf32>
    %c0_3 = arith.constant 0 : index
    %c0_4 = arith.constant 0 : index
    %3 = vector.load %arg3[%c0_3, %c0_4] : memref<1x512xf32, #tpu.memory_space<vmem>>, vector<1x512xf32>
    %4 = vector.broadcast %3 : vector<1x512xf32> to vector<8x512xf32>
    %5 = arith.addf %2, %4 : vector<8x512xf32>
    %cst_5 = arith.constant 0.000000e+00 : f32
    %6 = vector.broadcast %cst_5 : f32 to vector<8x512xf32>
    %7 = arith.maximumf %5, %6 : vector<8x512xf32>
    %8 = arith.truncf %7 : vector<8x512xf32> to vector<8x512xbf16>
    %c0_6 = arith.constant 0 : index
    %c0_7 = arith.constant 0 : index
    %9 = vector.load %arg4[%c0_6, %c0_7] : memref<512x256xbf16, #tpu.memory_space<vmem>>, vector<512x256xbf16>
    %cst_8 = arith.constant dense<0.000000e+00> : vector<8x256xf32>
    %10 = tpu.matmul %8, %9, %cst_8 {dimension_numbers = #tpu.dot_dimension_numbers<[1], [0], [0], [1], [0, 0, 1, 1], [], []>} : vector<8x512xbf16>, vector<512x256xbf16>, vector<8x256xf32> -> vector<8x256xf32>
    %c0_9 = arith.constant 0 : index
    %c0_10 = arith.constant 0 : index
    %11 = vector.load %arg5[%c0_9, %c0_10] : memref<1x256xf32, #tpu.memory_space<vmem>>, vector<1x256xf32>
    %12 = vector.broadcast %11 : vector<1x256xf32> to vector<8x256xf32>
    %13 = arith.addf %10, %12 : vector<8x256xf32>
    %cst_11 = arith.constant 5.000000e-01 : f32
    %14 = vector.broadcast %cst_11 : f32 to vector<8x256xf32>
    %15 = arith.mulf %14, %13 : vector<8x256xf32>
    %16 = math.tanh %15 : vector<8x256xf32>
    %cst_12 = arith.constant 5.000000e-01 : f32
    %17 = vector.broadcast %cst_12 : f32 to vector<8x256xf32>
    %18 = arith.mulf %17, %16 : vector<8x256xf32>
    %cst_13 = arith.constant 5.000000e-01 : f32
    %19 = vector.broadcast %cst_13 : f32 to vector<8x256xf32>
    %20 = arith.addf %18, %19 : vector<8x256xf32>
    %c0_14 = arith.constant 0 : index
    %c0_15 = arith.constant 0 : index
    %21 = vector.load %arg6[%c0_14, %c0_15] : memref<1x256xbf16, #tpu.memory_space<vmem>>, vector<1x256xbf16>
    %22 = arith.truncf %20 : vector<8x256xf32> to vector<8x256xbf16>
    %cst_16 = arith.constant dense<0.000000e+00> : vector<1x8xf32>
    %23 = tpu.matmul %21, %22, %cst_16 {dimension_numbers = #tpu.dot_dimension_numbers<[1], [1], [0], [0], [0, 0, 1, 0], [], []>} : vector<1x256xbf16>, vector<8x256xbf16>, vector<1x8xf32> -> vector<1x8xf32>
    %c0_17 = arith.constant 0 : index
    %c0_18 = arith.constant 0 : index
    %24 = vector.load %arg7[%c0_17, %c0_18] : memref<1x1xf32, #tpu.memory_space<vmem>>, vector<1x1xf32>
    %25 = vector.broadcast %24 : vector<1x1xf32> to vector<1x8xf32>
    %26 = arith.addf %23, %25 : vector<1x8xf32>
    %c0_19 = arith.constant 0 : index
    %c0_20 = arith.constant 0 : index
    %27 = vector.load %arg8[%c0_19, %c0_20] : memref<1x8xf32, #tpu.memory_space<vmem>>, vector<1x8xf32>
    tpu.vector_store %arg8[%c0_19, %c0_20], %26 {strides = array<i32>} : memref<1x8xf32, #tpu.memory_space<vmem>>, vector<1x8xf32>,
    return
  }
  func.func @transform_0(%arg0: i32) -> (i32, i32) {
    %c0_i32 = arith.constant 0 : i32
    %c0_i32_0 = arith.constant 0 : i32
    return %arg0, %c0_i32 : i32, i32
  }
  func.func @transform_1(%arg0: i32) -> (i32, i32) {
    %c0_i32 = arith.constant 0 : i32
    %c0_i32_0 = arith.constant 0 : i32
    %c0_i32_1 = arith.constant 0 : i32
    return %c0_i32, %c0_i32_0 : i32, i32
  }
  func.func @transform_2(%arg0: i32) -> (i32, i32) {
    %c0_i32 = arith.constant 0 : i32
    %c0_i32_0 = arith.constant 0 : i32
    %c0_i32_1 = arith.constant 0 : i32
    return %c0_i32, %c0_i32_0 : i32, i32
  }
  func.func @transform_3(%arg0: i32) -> (i32, i32) {
    %c0_i32 = arith.constant 0 : i32
    %c0_i32_0 = arith.constant 0 : i32
    %c0_i32_1 = arith.constant 0 : i32
    return %c0_i32, %c0_i32_0 : i32, i32
  }
  func.func @transform_4(%arg0: i32) -> (i32, i32) {
    %c0_i32 = arith.constant 0 : i32
    %c0_i32_0 = arith.constant 0 : i32
    %c0_i32_1 = arith.constant 0 : i32
    return %c0_i32, %c0_i32_0 : i32, i32
  }
  func.func @transform_5(%arg0: i32) -> (i32, i32) {
    %c0_i32 = arith.constant 0 : i32
    %c0_i32_0 = arith.constant 0 : i32
    %c0_i32_1 = arith.constant 0 : i32
    return %c0_i32, %c0_i32_0 : i32, i32
  }
  func.func @transform_6(%arg0: i32) -> (i32, i32) {
    %c0_i32 = arith.constant 0 : i32
    %c0_i32_0 = arith.constant 0 : i32
    %c0_i32_1 = arith.constant 0 : i32
    return %c0_i32, %c0_i32_0 : i32, i32
  }
  func.func @transform_7(%arg0: i32) -> (i32, i32) {
    %c0_i32 = arith.constant 0 : i32
    %c0_i32_0 = arith.constant 0 : i32
    return %c0_i32, %arg0 : i32, i32
  }
}

</mosaic_0001>

<llo_original>
// kernel: tpu_custom_call.1
$region0: #{tpu_custom_call.1}
  #allocation0 [shape = 'u32[]', space=smem, size = 0x4, offset = 0x4, fixed_abs, tag = 'smem constant byte address 0x4 - core index']
  #allocation1 [shape = 'u32[72,128]{1,0:T(1,128)}', space=vmem, size = 0x9000, scoped, tag = 'internal scratch']
  #allocation2 [shape = 'f32[1,1]{1,0:T(1,128)S(1)}', space=vmem, size = 0x200, scoped, tag = 'scoped memory for tpu_custom_call.1']
  %s0 = inlined_call_operand.hbm [shape: bf16[8,32], index: 0, kind: input, shape index: {}]
  %s1 = inlined_call_operand.hbm [shape: bf16[32,512], index: 1, kind: input, shape index: {}]
  %s2 = inlined_call_operand.hbm [shape: f32[1,512], index: 2, kind: input, shape index: {}]
  %s3 = inlined_call_operand.hbm [shape: bf16[512,256], index: 3, kind: input, shape index: {}]
  %s4 = inlined_call_operand.vmem [shape: f32[1,256], index: 4, kind: input, shape index: {}]
  %s5 = inlined_call_operand.vmem [shape: bf16[1,256], index: 5, kind: input, shape index: {}]
  %s6 = inlined_call_operand.<no memory space> [shape: f32[1,1], index: 6, kind: input, shape index: {}]
  %s7 = inlined_call_operand.hbm [shape: f32[1,8], index: 7, kind: output, shape index: {}]
  %s8 = sld [smem:[#allocation0]]
  $region54: #{tpu_custom_call.1} parent=0
    _
  %s10 = ssub.s32 1, %s8
  %s11 = scalar_select 0, %s10, %s8
  %v12 = vstv %s6
  %13 = vst [vmem:[#allocation2] sm:$0x1] %v12
  $region1: #{tpu_custom_call.1} parent=0
    #allocation3 [shape = 'u8[2048]{0}', space=vmem, size = 0x800, scoped, tag = 'input window, operand 0, single buffered']
    #allocation4 [shape = 's32[1]{0}', space=sflag, size = 0x4, scoped, tag = 'scoped memory for tpu_custom_call.1']
    #allocation5 [shape = 's32[1]{0}', space=sflag, size = 0x4, scoped, tag = 'scoped memory for tpu_custom_call.1']
    #allocation6 [shape = 'u8[32768]{0}', space=vmem, size = 0x8000, scoped, tag = 'input window, operand 1, single buffered']
    #allocation7 [shape = 's32[1]{0}', space=sflag, size = 0x4, scoped, tag = 'scoped memory for tpu_custom_call.1']
    #allocation8 [shape = 'u8[2048]{0}', space=vmem, size = 0x800, scoped, tag = 'input window, operand 2, single buffered']
    #allocation9 [shape = 'u8[262144]{0}', space=vmem, size = 0x40000, scoped, tag = 'input window, operand 3, single buffered']
    #allocation10 [shape = 's32[1]{0}', space=sflag, size = 0x4, scoped, tag = 'scoped memory for tpu_custom_call.1']
    #allocation11 [shape = 'u8[512]{0}', space=vmem, size = 0x400, scoped, tag = 'output window, operand 0, single buffered']
    %14 = vsyncpa [#allocation4], 0
    %15 = vsyncpa [#allocation7], 0
    %16 = vsyncpa [#allocation10], 0
    %17 = vsyncpa [#allocation5], 0
    // Predicated region
    $region2: #{tpu_custom_call.1} parent=1 // pred_check
      _
    $region3: #{tpu_custom_call.1} parent=1 // pred_check_branch
      %19 = sbr.rel (0) target = $region5
    $region4: #{tpu_custom_call.1} parent=1 // pred_region
      %21 = vsyncadd [#allocation4], 0
      %s23 = sshll.u32 %s0, 4
      %s24 = int_to_ptr.hbm [resolvable:$true] %s23
      %s25 = sshll.u32 [#allocation3], 4
      %s26 = int_to_ptr.vmem [resolvable:$true] %s25
      %28 = dma.hbm_to_vmem [thread:$0]  %s24, 64, %s26, [#allocation4]
    $region5: #{tpu_custom_call.1} parent=1 // pred_fallthru
      _
    // Predicated region
    $region6: #{tpu_custom_call.1} parent=1 // pred_check
      _
    $region7: #{tpu_custom_call.1} parent=1 // pred_check_branch
      %30 = sbr.rel (0) target = $region9
    $region8: #{tpu_custom_call.1} parent=1 // pred_region
      %32 = vsyncadd [#allocation7], 0
      %s33 = sshll.u32 %s1, 4
      %s34 = int_to_ptr.hbm [resolvable:$true] %s33
      %s35 = sshll.u32 [#allocation6], 4
      %s36 = int_to_ptr.vmem [resolvable:$true] %s35
      %41 = dma.hbm_to_vmem [thread:$0]  %s34, 1024, %s36, [#allocation7], 256, 256, 16
    $region9: #{tpu_custom_call.1} parent=1 // pred_fallthru
      _
    // Predicated region
    $region10: #{tpu_custom_call.1} parent=1 // pred_check
      _
    $region11: #{tpu_custom_call.1} parent=1 // pred_check_branch
      %43 = sbr.rel (0) target = $region13
    $region12: #{tpu_custom_call.1} parent=1 // pred_region
      %45 = vsyncadd [#allocation7], 0
      %s47 = sshll.u32 %s2, 4
      %s48 = int_to_ptr.hbm [resolvable:$true] %s47
      %s49 = sshll.u32 [#allocation8], 4
      %s50 = int_to_ptr.vmem [resolvable:$true] %s49
      %52 = dma.hbm_to_vmem [thread:$0]  %s48, 64, %s50, [#allocation7]
    $region13: #{tpu_custom_call.1} parent=1 // pred_fallthru
      _
    // Predicated region
    $region14: #{tpu_custom_call.1} parent=1 // pred_check
      _
    $region15: #{tpu_custom_call.1} parent=1 // pred_check_branch
      %54 = sbr.rel (0) target = $region17
    $region16: #{tpu_custom_call.1} parent=1 // pred_region
      %56 = vsyncadd [#allocation10], 0
      %s57 = sshll.u32 %s3, 4
      %s58 = int_to_ptr.hbm [resolvable:$true] %s57
      %s59 = sshll.u32 [#allocation9], 4
      %s60 = int_to_ptr.vmem [resolvable:$true] %s59
      %65 = dma.hbm_to_vmem [thread:$0]  %s58, 8192, %s60, [#allocation10], 128, 128, 8
    $region17: #{tpu_custom_call.1} parent=1 // pred_fallthru
      _
    // Predicated region
    $region18: #{tpu_custom_call.1} parent=1 // pred_check
      _
    $region19: #{tpu_custom_call.1} parent=1 // pred_check_branch
      %67 = sbr.rel (0) target = $region21
    $region20: #{tpu_custom_call.1} parent=1 // pred_region
      _
    $region21: #{tpu_custom_call.1} parent=1 // pred_fallthru
      _
    // Predicated region
    $region22: #{tpu_custom_call.1} parent=1 // pred_check
      _
    $region23: #{tpu_custom_call.1} parent=1 // pred_check_branch
      %69 = sbr.rel (0) target = $region25
    $region24: #{tpu_custom_call.1} parent=1 // pred_region
      _
    $region25: #{tpu_custom_call.1} parent=1 // pred_fallthru
      _
    // Predicated region
    $region26: #{tpu_custom_call.1} parent=1 // pred_check
      _
    $region27: #{tpu_custom_call.1} parent=1 // pred_check_branch
      %71 = sbr.rel (0) target = $region29
    $region28: #{tpu_custom_call.1} parent=1 // pred_region
      _
    $region29: #{tpu_custom_call.1} parent=1 // pred_fallthru
      _
    // Predicated region
    $region30: #{tpu_custom_call.1} parent=1 // pred_check
      _
    $region31: #{tpu_custom_call.1} parent=1 // pred_check_branch
      %73 = sbr.rel (0) target = $region33
    $region32: #{tpu_custom_call.1} parent=1 // pred_region
      %75 = dma.done [#allocation4], 64
    $region33: #{tpu_custom_call.1} parent=1 // pred_fallthru
      _
    // Predicated region
    $region34: #{tpu_custom_call.1} parent=1 // pred_check
      _
    $region35: #{tpu_custom_call.1} parent=1 // pred_check_branch
      %77 = sbr.rel (0) target = $region37
    $region36: #{tpu_custom_call.1} parent=1 // pred_region
      %79 = dma.done [#allocation7], 1024
    $region37: #{tpu_custom_call.1} parent=1 // pred_fallthru
      _
    // Predicated region
    $region38: #{tpu_custom_call.1} parent=1 // pred_check
      _
    $region39: #{tpu_custom_call.1} parent=1 // pred_check_branch
      %81 = sbr.rel (0) target = $region41
    $region40: #{tpu_custom_call.1} parent=1 // pred_region
      %83 = dma.done [#allocation7], 64
    $region41: #{tpu_custom_call.1} parent=1 // pred_fallthru
      _
    // Predicated region
    $region42: #{tpu_custom_call.1} parent=1 // pred_check
      _
    $region43: #{tpu_custom_call.1} parent=1 // pred_check_branch
      %85 = sbr.rel (0) target = $region45
    $region44: #{tpu_custom_call.1} parent=1 // pred_region
      %87 = dma.done [#allocation10], 8192
    $region45: #{tpu_custom_call.1} parent=1 // pred_fallthru
      _
    %v89 = vld [vmem:[#allocation3] sm:$0xf]
    %v90 = vld [vmem:[#allocation6] sm:$0xff]
    %v91 = vld [vmem:[#allocation6 + $0x8] sm:$0xff]
    %v92 = vld [vmem:[#allocation6 + $0x10] sm:$0xff]
    %v93 = vld [vmem:[#allocation6 + $0x18] sm:$0xff]
    %v94 = vld [vmem:[#allocation6 + $0x20] sm:$0xff]
    %v95 = vld [vmem:[#allocation6 + $0x28] sm:$0xff]
    %v96 = vld [vmem:[#allocation6 + $0x30] sm:$0xff]
    %v97 = vld [vmem:[#allocation6 + $0x38] sm:$0xff]
    %v98 = vld [vmem:[#allocation8] sm:$0xf]
    %v100 = vperm.slane %v98, 0
    %v101 = vperm.slane %v98, 1
    %v102 = vperm.slane %v98, 2
    %v103 = vperm.slane %v98, 3
    %v116 = vunpack.c.l.b16 %v90
    %v117 = vunpack.c.h.b16 %v90
    %v118 = vunpack.c.l.b16 %v91
    %v119 = vunpack.c.h.b16 %v91
    %v120 = vunpack.c.l.b16 %v92
    %v121 = vunpack.c.h.b16 %v92
    %v122 = vunpack.c.l.b16 %v93
    %v123 = vunpack.c.h.b16 %v93
    %v124 = vunpack.c.l.b16 %v94
    %v125 = vunpack.c.h.b16 %v94
    %v126 = vunpack.c.l.b16 %v95
    %v127 = vunpack.c.h.b16 %v95
    %v128 = vunpack.c.l.b16 %v96
    %v129 = vunpack.c.h.b16 %v96
    %v130 = vunpack.c.l.b16 %v97
    %v131 = vunpack.c.h.b16 %v97
    %v132 = vpack.c.b16 %v120, %v116
    %v133 = vpack.c.b16 %v121, %v117
    %v134 = vpack.c.b16 %v122, %v118
    %v135 = vpack.c.b16 %v123, %v119
    %v136 = vpack.c.b16 %v128, %v124
    %v137 = vpack.c.b16 %v129, %v125
    %v138 = vpack.c.b16 %v130, %v126
    %v139 = vpack.c.b16 %v131, %v127
    %vm148 = vcmask 261120
    %v150 = vsel %vm148, %v89, 0
    %152 = vmatpush.bf16.msra.mxu0 0
    %153 = vmatpush.bf16.msra.mxu0 0
    %154 = vmatpush.bf16.msra.mxu0 0
    %155 = vmatpush.bf16.msra.mxu0 0
    %156 = vmatpush.bf16.msra.mxu0 0
    %157 = vmatpush.bf16.msra.mxu0 0
    %158 = vmatpush.bf16.msra.mxu0 %v136
    %159 = vmatpush.bf16.msra.mxu0 %v132
    %160 = vmatmul.bf16.gmra.mxu0 %v150
    %v161 = vpop.f32.mrf.mxu0
    %v162 = vadd.f32 %v100, %v161
    %v163 = vpop.f32.mrf.mxu0
    %164 = vdwg.mxu0
    %165 = vmatpush.bf16.msra.mxu0 0
    %166 = vmatpush.bf16.msra.mxu0 0
    %167 = vmatpush.bf16.msra.mxu0 0
    %168 = vmatpush.bf16.msra.mxu0 0
    %169 = vmatpush.bf16.msra.mxu0 0
    %170 = vmatpush.bf16.msra.mxu0 0
    %171 = vmatpush.bf16.msra.mxu0 %v137
    %172 = vmatpush.bf16.msra.mxu0 %v133
    %173 = vmatmul.bf16.gmra.mxu0 %v150
    %v174 = vpop.f32.mrf.mxu0
    %v175 = vadd.f32 %v101, %v174
    %v176 = vpop.f32.mrf.mxu0
    %177 = vdwg.mxu0
    %178 = vmatpush.bf16.msra.mxu0 0
    %179 = vmatpush.bf16.msra.mxu0 0
    %180 = vmatpush.bf16.msra.mxu0 0
    %181 = vmatpush.bf16.msra.mxu0 0
    %182 = vmatpush.bf16.msra.mxu0 0
    %183 = vmatpush.bf16.msra.mxu0 0
    %184 = vmatpush.bf16.msra.mxu0 %v138
    %185 = vmatpush.bf16.msra.mxu0 %v134
    %186 = vmatmul.bf16.gmra.mxu0 %v150
    %v187 = vpop.f32.mrf.mxu0
    %v188 = vadd.f32 %v102, %v187
    %v189 = vpop.f32.mrf.mxu0
    %190 = vdwg.mxu0
    %191 = vmatpush.bf16.msra.mxu0 0
    %192 = vmatpush.bf16.msra.mxu0 0
    %193 = vmatpush.bf16.msra.mxu0 0
    %194 = vmatpush.bf16.msra.mxu0 0
    %195 = vmatpush.bf16.msra.mxu0 0
    %196 = vmatpush.bf16.msra.mxu0 0
    %197 = vmatpush.bf16.msra.mxu0 %v139
    %198 = vmatpush.bf16.msra.mxu0 %v135
    %199 = vmatmul.bf16.gmra.mxu0 %v150
    %v200 = vpop.f32.mrf.mxu0
    %v201 = vadd.f32 %v103, %v200
    %v202 = vpop.f32.mrf.mxu0
    %203 = vdwg.mxu0
    %v204 = vmax.f32 %v162, 0.0
    %v205 = vmax.f32 %v175, 0.0
    %v206 = vmax.f32 %v188, 0.0
    %v207 = vmax.f32 %v201, 0.0
    %v208 = vpack.c.bf16 %v204, %v204
    %v209 = vpack.c.bf16 %v205, %v205
    %v210 = vpack.c.bf16 %v206, %v206
    %v211 = vpack.c.bf16 %v207, %v207
    %v212 = vld [vmem:[#allocation9] sm:$0xff]
    %v213 = vld [vmem:[#allocation9 + $0x8] sm:$0xff]
    %v214 = vld [vmem:[#allocation9 + $0x10] sm:$0xff]
    %v215 = vld [vmem:[#allocation9 + $0x18] sm:$0xff]
    %v216 = vld [vmem:[#allocation9 + $0x20] sm:$0xff]
    %v217 = vld [vmem:[#allocation9 + $0x28] sm:$0xff]
    %v218 = vld [vmem:[#allocation9 + $0x30] sm:$0xff]
    %v219 = vld [vmem:[#allocation9 + $0x38] sm:$0xff]
    %v220 = vld [vmem:[#allocation9 + $0x40] sm:$0xff]
    %v221 = vld [vmem:[#allocation9 + $0x48] sm:$0xff]
    %v222 = vld [vmem:[#allocation9 + $0x50] sm:$0xff]
    %v223 = vld [vmem:[#allocation9 + $0x58] sm:$0xff]
    %v224 = vld [vmem:[#allocation9 + $0x60] sm:$0xff]
    %v225 = vld [vmem:[#allocation9 + $0x68] sm:$0xff]
    %v226 = vld [vmem:[#allocation9 + $0x70] sm:$0xff]
    %v227 = vld [vmem:[#allocation9 + $0x78] sm:$0xff]
    %v228 = vld [vmem:[#allocation9 + $0x80] sm:$0xff]
    %v229 = vld [vmem:[#allocation9 + $0x88] sm:$0xff]
    %v230 = vld [vmem:[#allocation9 + $0x90] sm:$0xff]
    %v231 = vld [vmem:[#allocation9 + $0x98] sm:$0xff]
    %v232 = vld [vmem:[#allocation9 + $0xa0] sm:$0xff]
    %v233 = vld [vmem:[#allocation9 + $0xa8] sm:$0xff]
    %v234 = vld [vmem:[#allocation9 + $0xb0] sm:$0xff]
    %v235 = vld [vmem:[#allocation9 + $0xb8] sm:$0xff]
    %v236 = vld [vmem:[#allocation9 + $0xc0] sm:$0xff]
    %v237 = vld [vmem:[#allocation9 + $0xc8] sm:$0xff]
    %v238 = vld [vmem:[#allocation9 + $0xd0] sm:$0xff]
    %v239 = vld [vmem:[#allocation9 + $0xd8] sm:$0xff]
    %v240 = vld [vmem:[#allocation9 + $0xe0] sm:$0xff]
    %v241 = vld [vmem:[#allocation9 + $0xe8] sm:$0xff]
    %v242 = vld [vmem:[#allocation9 + $0xf0] sm:$0xff]
    %v243 = vld [vmem:[#allocation9 + $0xf8] sm:$0xff]
    %v244 = vld [vmem:[#allocation9 + $0x100] sm:$0xff]
    %v245 = vld [vmem:[#allocation9 + $0x108] sm:$0xff]
    %v246 = vld [vmem:[#allocation9 + $0x110] sm:$0xff]
    %v247 = vld [vmem:[#allocation9 + $0x118] sm:$0xff]
    %v248 = vld [vmem:[#allocation9 + $0x120] sm:$0xff]
    %v249 = vld [vmem:[#allocation9 + $0x128] sm:$0xff]
    %v250 = vld [vmem:[#allocation9 + $0x130] sm:$0xff]
    %v251 = vld [vmem:[#allocation9 + $0x138] sm:$0xff]
    %v252 = vld [vmem:[#allocation9 + $0x140] sm:$0xff]
    %v253 = vld [vmem:[#allocation9 + $0x148] sm:$0xff]
    %v254 = vld [vmem:[#allocation9 + $0x150] sm:$0xff]
    %v255 = vld [vmem:[#allocation9 + $0x158] sm:$0xff]
    %v256 = vld [vmem:[#allocation9 + $0x160] sm:$0xff]
    %v257 = vld [vmem:[#allocation9 + $0x168] sm:$0xff]
    %v258 = vld [vmem:[#allocation9 + $0x170] sm:$0xff]
    %v259 = vld [vmem:[#allocation9 + $0x178] sm:$0xff]
    %v260 = vld [vmem:[#allocation9 + $0x180] sm:$0xff]
    %v261 = vld [vmem:[#allocation9 + $0x188] sm:$0xff]
    %v262 = vld [vmem:[#allocation9 + $0x190] sm:$0xff]
    %v263 = vld [vmem:[#allocation9 + $0x198] sm:$0xff]
    %v264 = vld [vmem:[#allocation9 + $0x1a0] sm:$0xff]
    %v265 = vld [vmem:[#allocation9 + $0x1a8] sm:$0xff]
    %v266 = vld [vmem:[#allocation9 + $0x1b0] sm:$0xff]
    %v267 = vld [vmem:[#allocation9 + $0x1b8] sm:$0xff]
    %v268 = vld [vmem:[#allocation9 + $0x1c0] sm:$0xff]
    %v269 = vld [vmem:[#allocation9 + $0x1c8] sm:$0xff]
    %v270 = vld [vmem:[#allocation9 + $0x1d0] sm:$0xff]
    %v271 = vld [vmem:[#allocation9 + $0x1d8] sm:$0xff]
    %v272 = vld [vmem:[#allocation9 + $0x1e0] sm:$0xff]
    %v273 = vld [vmem:[#allocation9 + $0x1e8] sm:$0xff]
    %v274 = vld [vmem:[#allocation9 + $0x1f0] sm:$0xff]
    %v275 = vld [vmem:[#allocation9 + $0x1f8] sm:$0xff]
    %v276 = vld [vmem:[%s4] sm:$0x3]
    %v278 = vperm.slane %v276, 0
    %v279 = vperm.slane %v276, 1
    %v346 = vunpack.c.l.b16 %v212
    %v347 = vunpack.c.h.b16 %v212
    %v348 = vunpack.c.l.b16 %v213
    %v349 = vunpack.c.h.b16 %v213
    %v350 = vunpack.c.l.b16 %v214
    %v351 = vunpack.c.h.b16 %v214
    %v352 = vunpack.c.l.b16 %v215
    %v353 = vunpack.c.h.b16 %v215
    %v354 = vunpack.c.l.b16 %v216
    %v355 = vunpack.c.h.b16 %v216
    %v356 = vunpack.c.l.b16 %v217
    %v357 = vunpack.c.h.b16 %v217
    %v358 = vunpack.c.l.b16 %v218
    %v359 = vunpack.c.h.b16 %v218
    %v360 = vunpack.c.l.b16 %v219
    %v361 = vunpack.c.h.b16 %v219
    %v362 = vunpack.c.l.b16 %v220
    %v363 = vunpack.c.h.b16 %v220
    %v364 = vunpack.c.l.b16 %v221
    %v365 = vunpack.c.h.b16 %v221
    %v366 = vunpack.c.l.b16 %v222
    %v367 = vunpack.c.h.b16 %v222
    %v368 = vunpack.c.l.b16 %v223
    %v369 = vunpack.c.h.b16 %v223
    %v370 = vunpack.c.l.b16 %v224
    %v371 = vunpack.c.h.b16 %v224
    %v372 = vunpack.c.l.b16 %v225
    %v373 = vunpack.c.h.b16 %v225
    %v374 = vunpack.c.l.b16 %v226
    %v375 = vunpack.c.h.b16 %v226
    %v376 = vunpack.c.l.b16 %v227
    %v377 = vunpack.c.h.b16 %v227
    %v378 = vunpack.c.l.b16 %v228
    %v379 = vunpack.c.h.b16 %v228
    %v380 = vunpack.c.l.b16 %v229
    %v381 = vunpack.c.h.b16 %v229
    %v382 = vunpack.c.l.b16 %v230
    %v383 = vunpack.c.h.b16 %v230
    %v384 = vunpack.c.l.b16 %v231
    %v385 = vunpack.c.h.b16 %v231
    %v386 = vunpack.c.l.b16 %v232
    %v387 = vunpack.c.h.b16 %v232
    %v388 = vunpack.c.l.b16 %v233
    %v389 = vunpack.c.h.b16 %v233
    %v390 = vunpack.c.l.b16 %v234
    %v391 = vunpack.c.h.b16 %v234
    %v392 = vunpack.c.l.b16 %v235
    %v393 = vunpack.c.h.b16 %v235
    %v394 = vunpack.c.l.b16 %v236
    %v395 = vunpack.c.h.b16 %v236
    %v396 = vunpack.c.l.b16 %v237
    %v397 = vunpack.c.h.b16 %v237
    %v398 = vunpack.c.l.b16 %v238
    %v399 = vunpack.c.h.b16 %v238
    %v400 = vunpack.c.l.b16 %v239
    %v401 = vunpack.c.h.b16 %v239
    %v402 = vunpack.c.l.b16 %v240
    %v403 = vunpack.c.h.b16 %v240
    %v404 = vunpack.c.l.b16 %v241
    %v405 = vunpack.c.h.b16 %v241
    %v406 = vunpack.c.l.b16 %v242
    %v407 = vunpack.c.h.b16 %v242
    %v408 = vunpack.c.l.b16 %v243
    %v409 = vunpack.c.h.b16 %v243
    %v410 = vunpack.c.l.b16 %v244
    %v411 = vunpack.c.h.b16 %v244
    %v412 = vunpack.c.l.b16 %v245
    %v413 = vunpack.c.h.b16 %v245
    %v414 = vunpack.c.l.b16 %v246
    %v415 = vunpack.c.h.b16 %v246
    %v416 = vunpack.c.l.b16 %v247
    %v417 = vunpack.c.h.b16 %v247
    %v418 = vunpack.c.l.b16 %v248
    %v419 = vunpack.c.h.b16 %v248
    %v420 = vunpack.c.l.b16 %v249
    %v421 = vunpack.c.h.b16 %v249
    %v422 = vunpack.c.l.b16 %v250
    %v423 = vunpack.c.h.b16 %v250
    %v424 = vunpack.c.l.b16 %v251
    %v425 = vunpack.c.h.b16 %v251
    %v426 = vunpack.c.l.b16 %v252
    %v427 = vunpack.c.h.b16 %v252
    %v428 = vunpack.c.l.b16 %v253
    %v429 = vunpack.c.h.b16 %v253
    %v430 = vunpack.c.l.b16 %v254
    %v431 = vunpack.c.h.b16 %v254
    %v432 = vunpack.c.l.b16 %v255
    %v433 = vunpack.c.h.b16 %v255
    %v434 = vunpack.c.l.b16 %v256
    %v435 = vunpack.c.h.b16 %v256
    %v436 = vunpack.c.l.b16 %v257
    %v437 = vunpack.c.h.b16 %v257
    %v438 = vunpack.c.l.b16 %v258
    %v439 = vunpack.c.h.b16 %v258
    %v440 = vunpack.c.l.b16 %v259
    %v441 = vunpack.c.h.b16 %v259
    %v442 = vunpack.c.l.b16 %v260
    %v443 = vunpack.c.h.b16 %v260
    %v444 = vunpack.c.l.b16 %v261
    %v445 = vunpack.c.h.b16 %v261
    %v446 = vunpack.c.l.b16 %v262
    %v447 = vunpack.c.h.b16 %v262
    %v448 = vunpack.c.l.b16 %v263
    %v449 = vunpack.c.h.b16 %v263
    %v450 = vunpack.c.l.b16 %v264
    %v451 = vunpack.c.h.b16 %v264
    %v452 = vunpack.c.l.b16 %v265
    %v453 = vunpack.c.h.b16 %v265
    %v454 = vunpack.c.l.b16 %v266
    %v455 = vunpack.c.h.b16 %v266
    %v456 = vunpack.c.l.b16 %v267
    %v457 = vunpack.c.h.b16 %v267
    %v458 = vunpack.c.l.b16 %v268
    %v459 = vunpack.c.h.b16 %v268
    %v460 = vunpack.c.l.b16 %v269
    %v461 = vunpack.c.h.b16 %v269
    %v462 = vunpack.c.l.b16 %v270
    %v463 = vunpack.c.h.b16 %v270
    %v464 = vunpack.c.l.b16 %v271
    %v465 = vunpack.c.h.b16 %v271
    %v466 = vunpack.c.l.b16 %v272
    %v467 = vunpack.c.h.b16 %v272
    %v468 = vunpack.c.l.b16 %v273
    %v469 = vunpack.c.h.b16 %v273
    %v470 = vunpack.c.l.b16 %v274
    %v471 = vunpack.c.h.b16 %v274
    %v472 = vunpack.c.l.b16 %v275
    %v473 = vunpack.c.h.b16 %v275
    %v474 = vpack.c.b16 %v348, %v346
    %v475 = vpack.c.b16 %v349, %v347
    %v476 = vpack.c.b16 %v352, %v350
    %v477 = vpack.c.b16 %v353, %v351
    %v478 = vpack.c.b16 %v356, %v354
    %v479 = vpack.c.b16 %v357, %v355
    %v480 = vpack.c.b16 %v360, %v358
    %v481 = vpack.c.b16 %v361, %v359
    %v482 = vpack.c.b16 %v364, %v362
    %v483 = vpack.c.b16 %v365, %v363
    %v484 = vpack.c.b16 %v368, %v366
    %v485 = vpack.c.b16 %v369, %v367
    %v486 = vpack.c.b16 %v372, %v370
    %v487 = vpack.c.b16 %v373, %v371
    %v488 = vpack.c.b16 %v376, %v374
    %v489 = vpack.c.b16 %v377, %v375
    %v490 = vpack.c.b16 %v380, %v378
    %v491 = vpack.c.b16 %v381, %v379
    %v492 = vpack.c.b16 %v384, %v382
    %v493 = vpack.c.b16 %v385, %v383
    %v494 = vpack.c.b16 %v388, %v386
    %v495 = vpack.c.b16 %v389, %v387
    %v496 = vpack.c.b16 %v392, %v390
    %v497 = vpack.c.b16 %v393, %v391
    %v498 = vpack.c.b16 %v396, %v394
    %v499 = vpack.c.b16 %v397, %v395
    %v500 = vpack.c.b16 %v400, %v398
    %v501 = vpack.c.b16 %v401, %v399
    %v502 = vpack.c.b16 %v404, %v402
    %v503 = vpack.c.b16 %v405, %v403
    %v504 = vpack.c.b16 %v408, %v406
    %v505 = vpack.c.b16 %v409, %v407
    %v506 = vpack.c.b16 %v412, %v410
    %v507 = vpack.c.b16 %v413, %v411
    %v508 = vpack.c.b16 %v416, %v414
    %v509 = vpack.c.b16 %v417, %v415
    %v510 = vpack.c.b16 %v420, %v418
    %v511 = vpack.c.b16 %v421, %v419
    %v512 = vpack.c.b16 %v424, %v422
    %v513 = vpack.c.b16 %v425, %v423
    %v514 = vpack.c.b16 %v428, %v426
    %v515 = vpack.c.b16 %v429, %v427
    %v516 = vpack.c.b16 %v432, %v430
    %v517 = vpack.c.b16 %v433, %v431
    %v518 = vpack.c.b16 %v436, %v434
    %v519 = vpack.c.b16 %v437, %v435
    %v520 = vpack.c.b16 %v440, %v438
    %v521 = vpack.c.b16 %v441, %v439
    %v522 = vpack.c.b16 %v444, %v442
    %v523 = vpack.c.b16 %v445, %v443
    %v524 = vpack.c.b16 %v448, %v446
    %v525 = vpack.c.b16 %v449, %v447
    %v526 = vpack.c.b16 %v452, %v450
    %v527 = vpack.c.b16 %v453, %v451
    %v528 = vpack.c.b16 %v456, %v454
    %v529 = vpack.c.b16 %v457, %v455
    %v530 = vpack.c.b16 %v460, %v458
    %v531 = vpack.c.b16 %v461, %v459
    %v532 = vpack.c.b16 %v464, %v462
    %v533 = vpack.c.b16 %v465, %v463
    %v534 = vpack.c.b16 %v468, %v466
    %v535 = vpack.c.b16 %v469, %v467
    %v536 = vpack.c.b16 %v472, %v470
    %v537 = vpack.c.b16 %v473, %v471
    %602 = vmatpush.bf16.msra.mxu0 %v488
    %603 = vmatpush.bf16.msra.mxu0 %v486
    %604 = vmatpush.bf16.msra.mxu0 %v484
    %605 = vmatpush.bf16.msra.mxu0 %v482
    %606 = vmatpush.bf16.msra.mxu0 %v480
    %607 = vmatpush.bf16.msra.mxu0 %v478
    %608 = vmatpush.bf16.msra.mxu0 %v476
    %609 = vmatpush.bf16.msra.mxu0 %v474
    %610 = vmatmul.bf16.gmra.mxu0 %v208
    %v611 = vpop.f32.mrf.mxu0
    %v612 = vadd.f32 %v278, %v611
    %v613 = vpop.f32.mrf.mxu0
    %614 = vdwg.mxu0
    %615 = vmatpush.bf16.msra.mxu0 %v504
    %616 = vmatpush.bf16.msra.mxu0 %v502
    %617 = vmatpush.bf16.msra.mxu0 %v500
    %618 = vmatpush.bf16.msra.mxu0 %v498
    %619 = vmatpush.bf16.msra.mxu0 %v496
    %620 = vmatpush.bf16.msra.mxu0 %v494
    %621 = vmatpush.bf16.msra.mxu0 %v492
    %622 = vmatpush.bf16.msra.mxu0 %v490
    %623 = vmatmul.bf16.gmra.mxu0 %v209
    %v624 = vpop.f32.mrf.mxu0
    %v625 = vadd.f32 %v612, %v624
    %v626 = vpop.f32.mrf.mxu0
    %627 = vdwg.mxu0
    %628 = vmatpush.bf16.msra.mxu0 %v520
    %629 = vmatpush.bf16.msra.mxu0 %v518
    %630 = vmatpush.bf16.msra.mxu0 %v516
    %631 = vmatpush.bf16.msra.mxu0 %v514
    %632 = vmatpush.bf16.msra.mxu0 %v512
    %633 = vmatpush.bf16.msra.mxu0 %v510
    %634 = vmatpush.bf16.msra.mxu0 %v508
    %635 = vmatpush.bf16.msra.mxu0 %v506
    %636 = vmatmul.bf16.gmra.mxu0 %v210
    %v637 = vpop.f32.mrf.mxu0
    %v638 = vadd.f32 %v625, %v637
    %v639 = vpop.f32.mrf.mxu0
    %640 = vdwg.mxu0
    %641 = vmatpush.bf16.msra.mxu0 %v536
    %642 = vmatpush.bf16.msra.mxu0 %v534
    %643 = vmatpush.bf16.msra.mxu0 %v532
    %644 = vmatpush.bf16.msra.mxu0 %v530
    %645 = vmatpush.bf16.msra.mxu0 %v528
    %646 = vmatpush.bf16.msra.mxu0 %v526
    %647 = vmatpush.bf16.msra.mxu0 %v524
    %648 = vmatpush.bf16.msra.mxu0 %v522
    %649 = vmatmul.bf16.gmra.mxu0 %v211
    %v650 = vpop.f32.mrf.mxu0
    %v651 = vadd.f32 %v638, %v650
    %v652 = vpop.f32.mrf.mxu0
    %653 = vdwg.mxu0
    %654 = vmatpush.bf16.msra.mxu0 %v489
    %655 = vmatpush.bf16.msra.mxu0 %v487
    %656 = vmatpush.bf16.msra.mxu0 %v485
    %657 = vmatpush.bf16.msra.mxu0 %v483
    %658 = vmatpush.bf16.msra.mxu0 %v481
    %659 = vmatpush.bf16.msra.mxu0 %v479
    %660 = vmatpush.bf16.msra.mxu0 %v477
    %661 = vmatpush.bf16.msra.mxu0 %v475
    %662 = vmatmul.bf16.gmra.mxu0 %v208
    %v663 = vpop.f32.mrf.mxu0
    %v664 = vadd.f32 %v279, %v663
    %v665 = vpop.f32.mrf.mxu0
    %666 = vdwg.mxu0
    %667 = vmatpush.bf16.msra.mxu0 %v505
    %668 = vmatpush.bf16.msra.mxu0 %v503
    %669 = vmatpush.bf16.msra.mxu0 %v501
    %670 = vmatpush.bf16.msra.mxu0 %v499
    %671 = vmatpush.bf16.msra.mxu0 %v497
    %672 = vmatpush.bf16.msra.mxu0 %v495
    %673 = vmatpush.bf16.msra.mxu0 %v493
    %674 = vmatpush.bf16.msra.mxu0 %v491
    %675 = vmatmul.bf16.gmra.mxu0 %v209
    %v676 = vpop.f32.mrf.mxu0
    %v677 = vadd.f32 %v664, %v676
    %v678 = vpop.f32.mrf.mxu0
    %679 = vdwg.mxu0
    %680 = vmatpush.bf16.msra.mxu0 %v521
    %681 = vmatpush.bf16.msra.mxu0 %v519
    %682 = vmatpush.bf16.msra.mxu0 %v517
    %683 = vmatpush.bf16.msra.mxu0 %v515
    %684 = vmatpush.bf16.msra.mxu0 %v513
    %685 = vmatpush.bf16.msra.mxu0 %v511
    %686 = vmatpush.bf16.msra.mxu0 %v509
    %687 = vmatpush.bf16.msra.mxu0 %v507
    %688 = vmatmul.bf16.gmra.mxu0 %v210
    %v689 = vpop.f32.mrf.mxu0
    %v690 = vadd.f32 %v677, %v689
    %v691 = vpop.f32.mrf.mxu0
    %692 = vdwg.mxu0
    %693 = vmatpush.bf16.msra.mxu0 %v537
    %694 = vmatpush.bf16.msra.mxu0 %v535
    %695 = vmatpush.bf16.msra.mxu0 %v533
    %696 = vmatpush.bf16.msra.mxu0 %v531
    %697 = vmatpush.bf16.msra.mxu0 %v529
    %698 = vmatpush.bf16.msra.mxu0 %v527
    %699 = vmatpush.bf16.msra.mxu0 %v525
    %700 = vmatpush.bf16.msra.mxu0 %v523
    %701 = vmatmul.bf16.gmra.mxu0 %v211
    %v702 = vpop.f32.mrf.mxu0
    %v703 = vadd.f32 %v690, %v702
    %v704 = vpop.f32.mrf.mxu0
    %705 = vdwg.mxu0
    %v706 = vmul.f32 %v651, 0.5
    %v707 = vmul.f32 %v703, 0.5
    %v708 = vtanh.pop %v706
    %v709 = vtanh.pop %v707
    %v710 = vmul.f32 %v708, 0.5
    %v711 = vmul.f32 %v709, 0.5
    %v712 = vadd.f32 %v710, 0.5
    %v713 = vadd.f32 %v711, 0.5
    %v714 = vld [vmem:[%s5] sm:$0x3]
    %v715 = vpack.c.bf16 %v712, %v712
    %v716 = vpack.c.bf16 %v713, %v713
    %v717 = vld [vmem:[#allocation2] sm:$0x1]
    %719 = vset.pattern.permute.xlu0 0
    %720 = vperm.xlu0 %719, %v717
    %v721 = vpop.permute.xlu0 %720
    %v723 = vperm.slane %v721, 0
    %725 = vst [vmem:[#allocation1] ss:$9 sm:$0xff] %v714
    %v726 = vld [vmem:[#allocation1] sm:$0xff]
    %v727 = vld [vmem:[#allocation1 + $0x9] sm:$0xff]
    %730 = vmatpush.bf16.xpose.msra.mxu0 0
    %731 = vmatpush.bf16.xpose.msra.mxu0 0
    %732 = vmatpush.bf16.xpose.msra.mxu0 0
    %733 = vmatpush.bf16.xpose.msra.mxu0 0
    %734 = vmatpush.bf16.xpose.msra.mxu0 0
    %735 = vmatpush.bf16.xpose.msra.mxu0 0
    %736 = vmatpush.bf16.xpose.msra.mxu0 0
    %737 = vmatpush.bf16.xpose.msra.mxu0 %v715
    %738 = vmatmul.bf16.gmra.mxu0 %v726
    %v739 = vpop.f32.mrf.mxu0
    %v740 = vadd.f32 %v723, %v739
    %v741 = vpop.f32.mrf.mxu0
    %742 = vdwg.mxu0
    %743 = vmatpush.bf16.xpose.msra.mxu0 0
    %744 = vmatpush.bf16.xpose.msra.mxu0 0
    %745 = vmatpush.bf16.xpose.msra.mxu0 0
    %746 = vmatpush.bf16.xpose.msra.mxu0 0
    %747 = vmatpush.bf16.xpose.msra.mxu0 0
    %748 = vmatpush.bf16.xpose.msra.mxu0 0
    %749 = vmatpush.bf16.xpose.msra.mxu0 0
    %750 = vmatpush.bf16.xpose.msra.mxu0 %v716
    %751 = vmatmul.bf16.gmra.mxu0 %v727
    %v752 = vpop.f32.mrf.mxu0
    %v753 = vadd.f32 %v740, %v752
    %v754 = vpop.f32.mrf.mxu0
    %755 = vdwg.mxu0
    %vm756 = vcmask 57344
    %757 = vst.msk [vmem:[#allocation11] sm:$0x1] %vm756, %v753
    // Predicated region
    $region46: #{tpu_custom_call.1} parent=1 // pred_check
      _
    $region47: #{tpu_custom_call.1} parent=1 // pred_check_branch
      %759 = sbr.rel (0) target = $region49
    $region48: #{tpu_custom_call.1} parent=1 // pred_region
      %761 = vsyncadd [#allocation5], 0
      %s763 = sshll.u32 [#allocation11], 4
      %s764 = int_to_ptr.vmem [resolvable:$true] %s763
      %s765 = sshll.u32 %s7, 4
      %s766 = int_to_ptr.hbm [resolvable:$true] %s765
      %768 = dma.vmem_to_hbm [thread:$0]  %s764, 16, %s766, [#allocation5]
    $region49: #{tpu_custom_call.1} parent=1 // pred_fallthru
      _
    // Predicated region
    $region50: #{tpu_custom_call.1} parent=1 // pred_check
      _
    $region51: #{tpu_custom_call.1} parent=1 // pred_check_branch
      %770 = sbr.rel (0) target = $region53
    $region52: #{tpu_custom_call.1} parent=1 // pred_region
      %772 = dma.done [#allocation5], 16
    $region53: #{tpu_custom_call.1} parent=1 // pred_fallthru
      _
    %773 = vsyncpa [#allocation4], 1
    %774 = vsyncpa [#allocation7], 1
    %775 = vsyncpa [#allocation10], 1
    %776 = vsyncpa [#allocation5], 1

</llo_original>
